<compile_context>
chip_gen: v7x
topology: tpu7x:2x2x1
jax: 0.10.0
libtpu: 0.0.40
codegen_flags: <defaults>
</compile_context>

<pallas_src>
import math

import jax
import jax.numpy as jnp
from jax.experimental import pallas as pl
from jax.experimental.pallas import tpu as pltpu


def _get_pad(size: int, multiple: int):
    new_size = math.ceil(size / multiple) * multiple
    pad = new_size - size
    left = pad // 2
    return left, pad - left


def _round_up(v: int, m: int) -> int:
    return ((v + m - 1) // m) * m


def _sublane_multiple(dtype) -> int:
    # f32 -> 8 rows per vreg, bf16 -> 16, int8/fp8 -> 32 (packed along sublanes).
    return max(8, 32 // jnp.dtype(dtype).itemsize)


def _vmem_budget():
    """Generation-aware (vmem_limit_bytes, per-step tile byte target)."""
    try:
        phys = int(pltpu.get_tpu_info().vmem_capacity_bytes)
    except Exception:
        phys = 64 << 20  # conservative (v7x-sized) fallback
    limit = min(phys // 2, 64 << 20)  # ~32 MiB on v7x, ~64 MiB on v5e/v6e
    return limit, limit // 2          # leave half the limit as Mosaic headroom


def _choose_row_tile(nc, vmem_per_row, hbm_per_row, target_bytes, row_align=1):
    """How many flattened (N*C) rows go in one grid step.

    `vmem_per_row` must already be the PHYSICAL (sublane/lane padded,
    double-buffered in+out) byte cost of one row.
    """
    tc = max(1, int(target_bytes // max(1, vmem_per_row)))
    tc = min(tc, nc)
    # Deepen the pipeline (~8 steps hides the first-input/last-output DMA and
    # lets v7x split the parallel axis across both TCs), but never drop the
    # per-step HBM traffic below ~1 MiB — per-step overhead (~0.35 us) must
    # stay noise on all generations (v5e/v6e are single-TC, so the only reason
    # to shrink tiles there is pipeline depth, not core-splitting).
    min_rows_per_step = max(1, (1 << 20) // max(1, hbm_per_row))
    for steps in (8, 4, 2):
        cand = pl.cdiv(nc, steps)
        if cand >= min_rows_per_step:
            tc = min(tc, cand)
            break
    if row_align > 1 and tc < nc:
        # Keep the sublane-dim block size aligned (8/16/32 rows by dtype) so
        # the (8,128) block-shape rule holds on the flattened 2-D path.
        tc = min(nc, max(row_align, (tc // row_align) * row_align))
    return int(max(1, tc))


def center_padding(x: jax.Array, multiple: int) -> jax.Array:
    """Pallas implementation of CenterPadding.forward for 4-D NCHW inputs."""
    if x.ndim != 4:
        # TODO(synk): generalize to arbitrary rank (PyTorch pads every dim past
        # the first two); the DINO use case is NCHW.
        raise NotImplementedError("center_padding expects a 4-D NCHW input")

    N, C, H, W = x.shape
    ph = _get_pad(H, multiple)
    pw = _get_pad(W, multiple)

    # Fast path: nothing to pad -> no kernel, no extra HBM traffic.
    if ph == (0, 0) and pw == (0, 0):
        return x

    Hn = H + ph[0] + ph[1]
    Wn = W + pw[0] + pw[1]
    NC = N * C
    dtype = x.dtype
    itemsize = jnp.dtype(dtype).itemsize
    sub = _sublane_multiple(dtype)
    vmem_limit, target = _vmem_budget()
    cparams = lambda: pltpu.CompilerParams(
        dimension_semantics=("parallel",),
        vmem_limit_bytes=vmem_limit,
    )

    # -------- lane-dense 2-D path: H-only padding (the common DINO case) ----
    if pw == (0, 0):
        L_in, L_out = H * W, Hn * W
        lead, trail = ph[0] * W, ph[1] * W
        # Physical, double-buffered in+out VMEM bytes per (N*C) row.
        vmem_per_row = 2 * (_round_up(L_in, 128) + _round_up(L_out, 128)) * itemsize
        hbm_per_row = (L_in + L_out) * itemsize
        tc = _choose_row_tile(NC, vmem_per_row, hbm_per_row, target, row_align=sub)
        if tc * vmem_per_row <= (vmem_limit * 3) // 4:
            # Flattening contiguous NCHW spatial dims is metadata-only; the
            # output's last dim (Hn*W) is lane-dense, so the interior store and
            # the writeback DMA use full 128-lane vectors.
            x2 = x.reshape(NC, L_in)

            def kernel2d(x_ref, o_ref):
                # Zero strips + one interior store: each output element written
                # exactly once, no output-sized VMEM temporary.
                if lead:
                    o_ref[:, :lead] = jnp.zeros((tc, lead), dtype)
                o_ref[:, lead:lead + L_in] = x_ref[...]
                if trail:
                    o_ref[:, lead + L_in:] = jnp.zeros((tc, trail), dtype)

            out2 = pl.pallas_call(
                kernel2d,
                out_shape=jax.ShapeDtypeStruct((NC, L_out), dtype),
                grid=(pl.cdiv(NC, tc),),
                # Last dims equal the full array dims; tc is sublane-aligned
                # (or == NC), so the (8,128) block rule is satisfied.
                in_specs=[pl.BlockSpec((tc, L_in), lambda i: (i, 0))],
                out_specs=pl.BlockSpec((tc, L_out), lambda i: (i, 0)),
                compiler_params=cparams(),
            )(x2)
            return out2.reshape(N, C, Hn, W)
        # else: tile too large for the flattened layout -> fall through to the
        # 3-D path, whose per-row VMEM cost stays small even at tc=1.

    # -------- general 3-D path: W padding needed (or 2-D tile too big) ------
    vmem_per_row = 2 * (
        _round_up(H, sub) * _round_up(W, 128)
        + _round_up(Hn, sub) * _round_up(Wn, 128)
    ) * itemsize
    hbm_per_row = (H * W + Hn * Wn) * itemsize
    tc = _choose_row_tile(NC, vmem_per_row, hbm_per_row, target)

    # Merging the two leading contiguous dims is a metadata-only reshape.
    x3 = x.reshape(NC, H, W)
    ph_l, ph_r = ph
    pw_l, pw_r = pw

    def kernel3d(x_ref, o_ref):
        # Pad W with a lane-axis zero-concat (no sublane-axis concatenate, so
        # no packed-dtype repack), then store the interior H rows once and the
        # top/bottom zero strips once each — every output element written
        # exactly once, no output-sized VMEM temporary.
        row = x_ref[...]
        if pw_l or pw_r:
            parts = []
            if pw_l:
                parts.append(jnp.zeros((tc, H, pw_l), dtype))
            parts.append(row)
            if pw_r:
                parts.append(jnp.zeros((tc, H, pw_r), dtype))
            row = jnp.concatenate(parts, axis=2)
        if ph_l:
            o_ref[:, :ph_l, :] = jnp.zeros((tc, ph_l, Wn), dtype)
        o_ref[:, ph_l:ph_l + H, :] = row
        if ph_r:
            o_ref[:, ph_l + H:, :] = jnp.zeros((tc, ph_r, Wn), dtype)

    out3 = pl.pallas_call(
        kernel3d,
        out_shape=jax.ShapeDtypeStruct((NC, Hn, Wn), dtype),
        grid=(pl.cdiv(NC, tc),),
        # Last two block dims equal the full array dims -> no (8,128) issue;
        # tc is a leading (non-tiled-layout) dim.
        in_specs=[pl.BlockSpec((tc, H, W), lambda i: (i, 0, 0))],
        out_specs=pl.BlockSpec((tc, Hn, Wn), lambda i: (i, 0, 0)),
        compiler_params=cparams(),
    )(x3)
    return out3.reshape(N, C, Hn, Wn)


if __name__ == "__main__":
    multiple = 8
    key = jax.random.PRNGKey(0)
    k1, k2, k3 = jax.random.split(key, 3)

    def ref_pad(x):
        ph = _get_pad(x.shape[2], multiple)
        pw = _get_pad(x.shape[3], multiple)
        return jnp.pad(x, ((0, 0), (0, 0), ph, pw))

    # 1) H-only padding (13 -> 16, W already aligned): lane-dense 2-D path.
    xa = jax.random.normal(k1, (2, 4, 13, 16), dtype=jnp.float32)
    oa = jax.block_until_ready(center_padding(xa, multiple))
    ra = ref_pad(xa)
    assert oa.shape == ra.shape and oa.dtype == xa.dtype, (oa.shape, ra.shape)
    assert bool(jnp.all(oa == ra)), "H-only padding mismatch vs reference"

    # 2) H and W padding (13x13 -> 16x16, split (1,2)/(1,2)): general 3-D path.
    xb = jax.random.normal(k2, (2, 4, 13, 13), dtype=jnp.float32)
    ob = jax.block_until_ready(center_padding(xb, multiple))
    rb = ref_pad(xb)
    assert ob.shape == rb.shape and ob.dtype == xb.dtype, (ob.shape, rb.shape)
    assert bool(jnp.all(ob == rb)), "H+W padding mismatch vs reference"

    # 3) Already aligned input: no-padding fast path (no kernel launched).
    xc = jax.random.normal(k3, (1, 3, 16, 16), dtype=jnp.float32)
    oc = jax.block_until_ready(center_padding(xc, multiple))
    assert oc.shape == xc.shape and bool(jnp.all(oc == xc))

    print("KERNEL_OK")
</pallas_src>

<mosaic_0001>
module attributes {stable_mosaic.version = 11 : i64} {
  func.func @kernel2d(%arg0: i32, %arg1: memref<8x208xf32, #tpu.memory_space<vmem>>, %arg2: memref<8x256xf32, #tpu.memory_space<vmem>>) attributes {dimension_semantics = [#tpu.dimension_semantics<parallel>], iteration_bounds = array<i64: 1>, scalar_prefetch = 0 : i64, scratch_operands = 0 : i64, tpu.core_type = #tpu.core_type<tc>, window_params = [{transform_indices = @transform_0, window_bounds = array<i64: 8, 208>}, {transform_indices = @transform_1, window_bounds = array<i64: 8, 256>}]} {
    %cst = arith.constant 0.000000e+00 : f32
    %0 = vector.broadcast %cst : f32 to vector<8x16xf32>
    %c0 = arith.constant 0 : index
    %c0_0 = arith.constant 0 : index
    %1 = vector.load %arg2[%c0, %c0_0] : memref<8x256xf32, #tpu.memory_space<vmem>>, vector<8x16xf32>
    tpu.vector_store %arg2[%c0, %c0_0], %0 {strides = array<i32>} : memref<8x256xf32, #tpu.memory_space<vmem>>, vector<8x16xf32>,
    %c0_1 = arith.constant 0 : index
    %c0_2 = arith.constant 0 : index
    %2 = vector.load %arg1[%c0_1, %c0_2] : memref<8x208xf32, #tpu.memory_space<vmem>>, vector<8x208xf32>
    %c0_3 = arith.constant 0 : index
    %c16 = arith.constant 16 : index
    %3 = vector.load %arg2[%c0_3, %c16] : memref<8x256xf32, #tpu.memory_space<vmem>>, vector<8x208xf32>
    tpu.vector_store %arg2[%c0_3, %c16], %2 {strides = array<i32>} : memref<8x256xf32, #tpu.memory_space<vmem>>, vector<8x208xf32>,
    %cst_4 = arith.constant 0.000000e+00 : f32
    %4 = vector.broadcast %cst_4 : f32 to vector<8x32xf32>
    %c0_5 = arith.constant 0 : index
    %c224 = arith.constant 224 : index
    %5 = vector.load %arg2[%c0_5, %c224] : memref<8x256xf32, #tpu.memory_space<vmem>>, vector<8x32xf32>
    tpu.vector_store %arg2[%c0_5, %c224], %4 {strides = array<i32>} : memref<8x256xf32, #tpu.memory_space<vmem>>, vector<8x32xf32>,
    return
  }
  func.func @transform_0(%arg0: i32) -> (i32, i32) {
    %c0_i32 = arith.constant 0 : i32
    %c0_i32_0 = arith.constant 0 : i32
    return %arg0, %c0_i32 : i32, i32
  }
  func.func @transform_1(%arg0: i32) -> (i32, i32) {
    %c0_i32 = arith.constant 0 : i32
    %c0_i32_0 = arith.constant 0 : i32
    return %arg0, %c0_i32 : i32, i32
  }
}

</mosaic_0001>

<llo_original>
// kernel: tpu_custom_call.1
$region0: #{tpu_custom_call.1}
  #allocation0 [shape = 'u32[]', space=smem, size = 0x4, offset = 0x4, fixed_abs, tag = 'smem constant byte address 0x4 - core index']
  #allocation1 [shape = 'u32[144,128]{1,0:T(1,128)}', space=vmem, size = 0x12000, scoped, tag = 'internal scratch']
  %s0 = inlined_call_operand.hbm [shape: f32[8,208], index: 0, kind: input, shape index: {}]
  %s1 = inlined_call_operand.hbm [shape: f32[8,256], index: 1, kind: output, shape index: {}]
  %s2 = sld [smem:[#allocation0]]
  $region18: #{tpu_custom_call.1} parent=0
    _
  %s4 = ssub.s32 1, %s2
  %s5 = scalar_select 0, %s4, %s2
  $region1: #{tpu_custom_call.1} parent=0
    #allocation2 [shape = 'u8[8192]{0}', space=vmem, size = 0x2000, scoped, tag = 'input window, operand 0, single buffered']
    #allocation3 [shape = 's32[1]{0}', space=sflag, size = 0x4, scoped, tag = 'scoped memory for tpu_custom_call.1']
    #allocation4 [shape = 's32[1]{0}', space=sflag, size = 0x4, scoped, tag = 'scoped memory for tpu_custom_call.1']
    #allocation5 [shape = 'u8[8192]{0}', space=vmem, size = 0x2000, scoped, tag = 'output window, operand 0, single buffered']
    %6 = vsyncpa [#allocation3], 0
    %7 = vsyncpa [#allocation4], 0
    // Predicated region
    $region2: #{tpu_custom_call.1} parent=1 // pred_check
      _
    $region3: #{tpu_custom_call.1} parent=1 // pred_check_branch
      %9 = sbr.rel (0) target = $region5
    $region4: #{tpu_custom_call.1} parent=1 // pred_region
      %s11 = ssub.s32 256, 256
      %12 = vsyncadd [#allocation3], %s11
      %s14 = sshll.u32 [#allocation2], 4
      %s15 = int_to_ptr.vmem [resolvable:$true] %s14
      %17 = dma.hbm_to_vmem [thread:$0]  %s0, 256, %s15, [#allocation3]
    $region5: #{tpu_custom_call.1} parent=1 // pred_fallthru
      _
    // Predicated region
    $region6: #{tpu_custom_call.1} parent=1 // pred_check
      _
    $region7: #{tpu_custom_call.1} parent=1 // pred_check_branch
      %19 = sbr.rel (0) target = $region9
    $region8: #{tpu_custom_call.1} parent=1 // pred_region
      %20 = dma.done [#allocation3], 256
    $region9: #{tpu_custom_call.1} parent=1 // pred_fallthru
      _
    %vm21 = vcmask 130048
    %22 = vst.msk [vmem:[#allocation5] sm:$0xff] %vm21, 0.0
    %v23 = vld [vmem:[#allocation2] sm:$0xff]
    %v24 = vld [vmem:[#allocation2 + $0x8] sm:$0xff]
    %27 = vrot.lane.b32.xlu0 %v23, 16
    %v28 = vpop.permute.xlu0 %27
    %29 = vrot.lane.b32.xlu0 %v24, 16
    %v30 = vpop.permute.xlu0 %29
    %v31 = vsel %vm21, %v28, %v30
    %vm34 = vcmask 1047680
    %35 = vst.msk [vmem:[#allocation5] sm:$0xff] %vm34, %v28
    %vm36 = vcmask 785408
    %37 = vst.msk [vmem:[#allocation5 + $0x8] sm:$0xff] %vm36, %v31
    %vm38 = vcmask 1048320
    %39 = vst.msk [vmem:[#allocation5 + $0x8] sm:$0xff] %vm38, 0.0
    // Predicated region
    $region10: #{tpu_custom_call.1} parent=1 // pred_check
      _
    $region11: #{tpu_custom_call.1} parent=1 // pred_check_branch
      %41 = sbr.rel (0) target = $region13
    $region12: #{tpu_custom_call.1} parent=1 // pred_region
      %s43 = ssub.s32 256, 256
      %44 = vsyncadd [#allocation4], %s43
      %s46 = sshll.u32 [#allocation5], 4
      %s47 = int_to_ptr.vmem [resolvable:$true] %s46
      %49 = dma.vmem_to_hbm [thread:$0]  %s47, 256, %s1, [#allocation4]
    $region13: #{tpu_custom_call.1} parent=1 // pred_fallthru
      _
    // Predicated region
    $region14: #{tpu_custom_call.1} parent=1 // pred_check
      _
    $region15: #{tpu_custom_call.1} parent=1 // pred_check_branch
      %51 = sbr.rel (0) target = $region17
    $region16: #{tpu_custom_call.1} parent=1 // pred_region
      %52 = dma.done [#allocation4], 256
    $region17: #{tpu_custom_call.1} parent=1 // pred_fallthru
      _
    %53 = vsyncpa [#allocation3], 1
    %54 = vsyncpa [#allocation4], 1

</llo_original>
